<compile_context>
chip_gen: v7x
topology: tpu7x:2x2x1
jax: 0.10.0
libtpu: 0.0.40
codegen_flags: <defaults>
</compile_context>

<pallas_src>
import functools

import jax
import jax.numpy as jnp
from jax import lax
from jax.experimental import pallas as pl
from jax.experimental.pallas import tpu as pltpu


def _round_up(x, m):
    return (x + m - 1) // m * m


def rnn_seq_kernel(x_ref, h0_ref, wx_ref, wh_ref, b_ref, out_ref, h_carry, *,
                   num_logits):
    """One grid step = one (batch block, time block).

    x_ref : (1, Tb*Bb, I)      time-block of inputs, batch-block laid out flat
    h0_ref: (Bb, F_pad)        initial hidden slab (hidden at lanes [O, O+H))
    wx_ref: (I, F_pad)         fused input->output weights (resident)
    wh_ref: (F_pad, F_pad)     fused hidden->output weights, zero outside rows
                               [O, O+H) (resident)
    b_ref : (1, F_pad)         fused bias (resident)
    out_ref:(Tb, Bb, F_pad)    per-step slabs: lanes [0,O)=log_softmax logits,
                               lanes [O,O+H)=new hidden
    h_carry:(Bb, F_pad) VMEM   recurrent carry (full slab) across time blocks
    """
    t_blk = pl.program_id(1)
    Tb, Bb, F_pad = out_ref.shape

    @pl.when(t_blk == 0)
    def _():
        h_carry[...] = h0_ref[...]

    # ---- hoisted input projection: one matmul for the whole time block -----
    # (M = Tb*Bb rows; no recurrent dependence, so it is off the serial path.)
    xproj = jnp.dot(x_ref[0], wx_ref[...],
                    preferred_element_type=jnp.float32) + b_ref[...]

    wh = wh_ref[...]
    lane = lax.broadcasted_iota(jnp.int32, (Bb, F_pad), 1)
    is_logit = lane < num_logits

    # ---- serial recurrence: per step only h @ Wh + masked log_softmax ------
    h = h_carry[...]
    for t in range(Tb):                      # static unroll (Tb is small)
        fused = xproj[t * Bb:(t + 1) * Bb, :] + jnp.dot(
            h.astype(wh.dtype), wh, preferred_element_type=jnp.float32)
        # log_softmax restricted to the logit lanes (f32 math; -1e30 mask
        # underflows cleanly in exp, padding lanes never affect max / LSE).
        masked = jnp.where(is_logit, fused, jnp.float32(-1e30))
        m = jnp.max(masked, axis=-1, keepdims=True)
        lse = jnp.log(jnp.sum(jnp.exp(masked - m), axis=-1, keepdims=True)) + m
        slab = jnp.where(is_logit, fused - lse, fused)
        out_ref[t] = slab.astype(out_ref.dtype)
        h = slab                              # carry the full 128-lane slab
    h_carry[...] = h


def _prep_params(w_i2h, b_i2h, w_i2o, b_i2o, input_size, param_dtype):
    """One-time parameter transform (hoisted out of every per-step path).

    Fused output lane layout: [0, O) = logits, [O, O+H) = hidden, rest pad.
    Returns wx [I, F_pad], wh_full [F_pad, F_pad], bias [1, F_pad], F_pad.
    NOTE: wh_full rows outside [O, O+H) MUST be exactly zero — the recurrent
    state is the full slab and relies on those rows contributing nothing.
    """
    H = w_i2h.shape[0]
    O = w_i2o.shape[0]
    I = input_size
    F_pad = _round_up(O + H, 128)

    w_cat = jnp.concatenate([w_i2o, w_i2h], axis=0).T.astype(jnp.float32)  # [I+H, O+H]
    w_pad = jnp.zeros((I + H, F_pad), jnp.float32).at[:, :O + H].set(w_cat)
    wx = w_pad[:I].astype(param_dtype)                       # [I, F_pad]
    wh_full = jnp.zeros((F_pad, F_pad), jnp.float32)
    wh_full = wh_full.at[O:O + H, :].set(w_pad[I:]).astype(param_dtype)
    b = jnp.zeros((1, F_pad), jnp.float32).at[0, :O + H].set(
        jnp.concatenate([b_i2o, b_i2h]).astype(jnp.float32))
    return wx, wh_full, b, F_pad


def rnn_forward_sequence(xs, hidden0, w_i2h, b_i2h, w_i2o, b_i2o, *,
                         time_block=16, param_dtype=jnp.float32):
    """Fused multi-step RNN: one pallas_call, grid = (batch_blocks, time_blocks).

    xs: (T, B, I), hidden0: (B, H)  ->  (outputs (T, B, O), final hidden (B, H))
    """
    T, B, I = xs.shape
    H = w_i2h.shape[0]
    O = w_i2o.shape[0]

    Bb = min(_round_up(B, 8), 128)          # batch block (sublane aligned)
    B_pad = _round_up(B, Bb)
    n_bblk = B_pad // Bb
    Tb = min(T, time_block)                 # timesteps per grid step
    T_pad = _round_up(T, Tb)
    n_tblk = T_pad // Tb

    wx, wh, b, F_pad = _prep_params(w_i2h, b_i2h, w_i2o, b_i2o, I, param_dtype)

    # Pad + re-layout x so each grid step sees a flat 2-D (Tb*Bb, I) block:
    # (T_pad, B_pad, I) -> (n_bblk, T_pad*Bb, I), rows ordered (t, local batch).
    xs_p = jnp.zeros((T_pad, B_pad, I), param_dtype).at[:T, :B].set(
        xs.astype(param_dtype))
    xs_r = (xs_p.reshape(T_pad, n_bblk, Bb, I)
                .transpose(1, 0, 2, 3)
                .reshape(n_bblk, T_pad * Bb, I))

    # Initial hidden as a full slab: hidden at lanes [O, O+H), zeros elsewhere.
    h0_slab = jnp.zeros((B_pad, F_pad), jnp.float32).at[:B, O:O + H].set(
        hidden0.astype(jnp.float32))

    grid_spec = pltpu.PrefetchScalarGridSpec(
        num_scalar_prefetch=0,
        grid=(n_bblk, n_tblk),
        in_specs=[
            pl.BlockSpec((1, Tb * Bb, I), lambda bb, tb: (bb, tb, 0)),  # stream x block
            pl.BlockSpec((Bb, F_pad), lambda bb, tb: (bb, 0)),          # h0 slab (t==0)
            pl.BlockSpec((I, F_pad), lambda bb, tb: (0, 0)),            # wx resident
            pl.BlockSpec((F_pad, F_pad), lambda bb, tb: (0, 0)),        # wh resident
            pl.BlockSpec((1, F_pad), lambda bb, tb: (0, 0)),            # bias resident
        ],
        out_specs=pl.BlockSpec((Tb, Bb, F_pad), lambda bb, tb: (tb, bb, 0)),
        scratch_shapes=[pltpu.VMEM((Bb, F_pad), jnp.float32)],          # recurrent carry
    )

    out_slab = pl.pallas_call(
        functools.partial(rnn_seq_kernel, num_logits=O),
        out_shape=jax.ShapeDtypeStruct((T_pad, B_pad, F_pad), jnp.float32),
        grid_spec=grid_spec,
        compiler_params=pltpu.CompilerParams(
            # batch blocks independent (v7x megacore), time carried -> sequential
            dimension_semantics=("parallel", "arbitrary")),
    )(xs_r, h0_slab, wx, wh, b)

    outputs = out_slab[:T, :B, :O]                 # leading-lane slice (logits)
    final_hidden = out_slab[T - 1, :B, O:O + H]    # hidden of the last real step
    return outputs, final_hidden


def rnn_forward(x, hidden, w_i2h, b_i2h, w_i2o, b_i2o):
    """Pallas equivalent of RNN.forward(input, hidden) -> (output, hidden).

    Reuses the fused sequence kernel with T=1 (single launch, same math)."""
    outputs, new_hidden = rnn_forward_sequence(
        x[None], hidden, w_i2h, b_i2h, w_i2o, b_i2o, time_block=1)
    return outputs[0], new_hidden


def _reference(x, hidden, w_i2h, b_i2h, w_i2o, b_i2o):
    combined = jnp.concatenate([x, hidden], axis=1)
    new_hidden = combined @ w_i2h.T + b_i2h
    logits = combined @ w_i2o.T + b_i2o
    out = jax.nn.log_softmax(logits, axis=1)
    return out, new_hidden


if __name__ == "__main__":
    input_size, hidden_size, output_size = 16, 32, 8
    batch, seq_len = 2, 8

    key = jax.random.PRNGKey(0)
    k_x, k_h, k_wh, k_bh, k_wo, k_bo = jax.random.split(key, 6)

    fan_in = input_size + hidden_size
    bound = 1.0 / (fan_in ** 0.5)

    xs = jax.random.normal(k_x, (seq_len, batch, input_size), dtype=jnp.float32)
    hidden0 = jnp.zeros((batch, hidden_size), dtype=jnp.float32)  # initHidden, batched

    # PyTorch nn.Linear init: U(-1/sqrt(fan_in), 1/sqrt(fan_in)), weight (out, in)
    w_i2h = jax.random.uniform(k_wh, (hidden_size, fan_in), jnp.float32, -bound, bound)
    b_i2h = jax.random.uniform(k_bh, (hidden_size,), jnp.float32, -bound, bound)
    w_i2o = jax.random.uniform(k_wo, (output_size, fan_in), jnp.float32, -bound, bound)
    b_i2o = jax.random.uniform(k_bo, (output_size,), jnp.float32, -bound, bound)

    # --- single cell step (exact module.forward semantics) ------------------
    out, new_hidden = rnn_forward(xs[0], hidden0, w_i2h, b_i2h, w_i2o, b_i2o)
    jax.block_until_ready((out, new_hidden))

    ref_out, ref_hidden = _reference(xs[0], hidden0, w_i2h, b_i2h, w_i2o, b_i2o)
    assert jnp.allclose(out, ref_out, atol=1e-5, rtol=1e-5)
    assert jnp.allclose(new_hidden, ref_hidden, atol=1e-5, rtol=1e-5)

    # --- fused full-sequence path (time-blocked, hoisted x-projection) ------
    seq_out, seq_hidden = rnn_forward_sequence(
        xs, hidden0, w_i2h, b_i2h, w_i2o, b_i2o)
    jax.block_until_ready((seq_out, seq_hidden))

    h = hidden0
    ref_outs = []
    for t in range(seq_len):
        o, h = _reference(xs[t], h, w_i2h, b_i2h, w_i2o, b_i2o)
        ref_outs.append(o)
    ref_seq_out = jnp.stack(ref_outs)
    assert jnp.allclose(seq_out, ref_seq_out, atol=1e-4, rtol=1e-4)
    assert jnp.allclose(seq_hidden, h, atol=1e-4, rtol=1e-4)

    print("KERNEL_OK")
</pallas_src>

<mosaic_0001>
module attributes {stable_mosaic.version = 11 : i64} {
  func.func @rnn_seq_kernel(%arg0: i32, %arg1: i32, %arg2: memref<1x8x16xf32, #tpu.memory_space<vmem>>, %arg3: memref<8x128xf32, #tpu.memory_space<vmem>>, %arg4: memref<16x128xf32, #tpu.memory_space<vmem>>, %arg5: memref<128x128xf32, #tpu.memory_space<vmem>>, %arg6: memref<1x128xf32, #tpu.memory_space<vmem>>, %arg7: memref<1x8x128xf32, #tpu.memory_space<vmem>>, %arg8: memref<8x128xf32, #tpu.memory_space<vmem>>) attributes {dimension_semantics = [#tpu.dimension_semantics<parallel>, #tpu.dimension_semantics<arbitrary>], iteration_bounds = array<i64: 1, 1>, scalar_prefetch = 0 : i64, scratch_operands = 1 : i64, tpu.core_type = #tpu.core_type<tc>, window_params = [{transform_indices = @transform_0, window_bounds = array<i64: 1, 8, 16>}, {transform_indices = @transform_1, window_bounds = array<i64: 8, 128>}, {pipeline_mode = #tpu.pipeline_mode<synchronous>, transform_indices = @transform_2, window_bounds = array<i64: 16, 128>}, {pipeline_mode = #tpu.pipeline_mode<synchronous>, transform_indices = @transform_3, window_bounds = array<i64: 128, 128>}, {pipeline_mode = #tpu.pipeline_mode<synchronous>, transform_indices = @transform_4, window_bounds = array<i64: 1, 128>}, {transform_indices = @transform_5, window_bounds = array<i64: 1, 8, 128>}]} {
    %c0_i32 = arith.constant 0 : i32
    %0 = arith.cmpi eq, %arg1, %c0_i32 : i32
    %1 = arith.extui %0 : i1 to i32
    %c0_i32_0 = arith.constant 0 : i32
    %2 = arith.cmpi ne, %1, %c0_i32_0 : i32
    scf.if %2 {
      %c0_20 = arith.constant 0 : index
      %c0_21 = arith.constant 0 : index
      %35 = vector.load %arg3[%c0_20, %c0_21] : memref<8x128xf32, #tpu.memory_space<vmem>>, vector<8x128xf32>
      %c0_22 = arith.constant 0 : index
      %c0_23 = arith.constant 0 : index
      %36 = vector.load %arg8[%c0_22, %c0_23] : memref<8x128xf32, #tpu.memory_space<vmem>>, vector<8x128xf32>
      tpu.vector_store %arg8[%c0_22, %c0_23], %35 {strides = array<i32>} : memref<8x128xf32, #tpu.memory_space<vmem>>, vector<8x128xf32>,
    } else {
    }
    %c0 = arith.constant 0 : index
    %c0_1 = arith.constant 0 : index
    %c0_2 = arith.constant 0 : index
    %3 = vector.load %arg2[%c0, %c0_1, %c0_2] : memref<1x8x16xf32, #tpu.memory_space<vmem>>, vector<1x8x16xf32>
    %4 = vector.shape_cast %3 : vector<1x8x16xf32> to vector<8x16xf32>
    %c0_3 = arith.constant 0 : index
    %c0_4 = arith.constant 0 : index
    %5 = vector.load %arg4[%c0_3, %c0_4] : memref<16x128xf32, #tpu.memory_space<vmem>>, vector<16x128xf32>
    %cst = arith.constant dense<0.000000e+00> : vector<8x128xf32>
    %6 = tpu.matmul %4, %5, %cst {dimension_numbers = #tpu.dot_dimension_numbers<[1], [0], [0], [1], [0, 0, 1, 1], [], []>} : vector<8x16xf32>, vector<16x128xf32>, vector<8x128xf32> -> vector<8x128xf32>
    %c0_5 = arith.constant 0 : index
    %c0_6 = arith.constant 0 : index
    %7 = vector.load %arg6[%c0_5, %c0_6] : memref<1x128xf32, #tpu.memory_space<vmem>>, vector<1x128xf32>
    %8 = vector.broadcast %7 : vector<1x128xf32> to vector<8x128xf32>
    %9 = arith.addf %6, %8 : vector<8x128xf32>
    %c0_7 = arith.constant 0 : index
    %c0_8 = arith.constant 0 : index
    %10 = vector.load %arg5[%c0_7, %c0_8] : memref<128x128xf32, #tpu.memory_space<vmem>>, vector<128x128xf32>
    %11 = tpu.iota {dimensions = array<i32: 1>} : vector<8x128xi32>
    %c8_i32 = arith.constant 8 : i32
    %12 = vector.broadcast %c8_i32 : i32 to vector<8x128xi32>
    %13 = arith.cmpi slt, %11, %12 : vector<8x128xi32>
    %c0_9 = arith.constant 0 : index
    %c0_10 = arith.constant 0 : index
    %14 = vector.load %arg8[%c0_9, %c0_10] : memref<8x128xf32, #tpu.memory_space<vmem>>, vector<8x128xf32>
    %cst_11 = arith.constant dense<0.000000e+00> : vector<8x128xf32>
    %15 = tpu.matmul %14, %10, %cst_11 {dimension_numbers = #tpu.dot_dimension_numbers<[1], [0], [0], [1], [0, 0, 1, 1], [], []>} : vector<8x128xf32>, vector<128x128xf32>, vector<8x128xf32> -> vector<8x128xf32>
    %16 = arith.addf %9, %15 : vector<8x128xf32>
    %cst_12 = arith.constant -1.000000e+30 : f32
    %17 = vector.broadcast %cst_12 : f32 to vector<8x128xf32>
    %18 = arith.select %13, %16, %17 : vector<8x128xi1>, vector<8x128xf32>
    %cst_13 = arith.constant dense<0xFF800000> : vector<8xf32>
    %19 = vector.multi_reduction <maximumf>, %18, %cst_13 [1] : vector<8x128xf32> to vector<8xf32>
    %20 = vector.shape_cast %19 : vector<8xf32> to vector<8x1xf32>
    %21 = vector.broadcast %20 : vector<8x1xf32> to vector<8x128xf32>
    %22 = arith.subf %18, %21 : vector<8x128xf32>
    %23 = math.exp %22 : vector<8x128xf32>
    %cst_14 = arith.constant dense<0.000000e+00> : vector<8xf32>
    %24 = vector.multi_reduction <add>, %23, %cst_14 [1] : vector<8x128xf32> to vector<8xf32>
    %25 = vector.shape_cast %24 : vector<8xf32> to vector<8x1xf32>
    %26 = math.log %25 : vector<8x1xf32>
    %27 = arith.addf %26, %20 : vector<8x1xf32>
    %28 = vector.broadcast %27 : vector<8x1xf32> to vector<8x128xf32>
    %29 = arith.subf %16, %28 : vector<8x128xf32>
    %30 = arith.select %13, %29, %16 : vector<8x128xi1>, vector<8x128xf32>
    %c0_15 = arith.constant 0 : index
    %c0_16 = arith.constant 0 : index
    %c0_17 = arith.constant 0 : index
    %31 = vector.load %arg7[%c0_15, %c0_16, %c0_17] : memref<1x8x128xf32, #tpu.memory_space<vmem>>, vector<1x8x128xf32>
    %32 = vector.shape_cast %31 : vector<1x8x128xf32> to vector<8x128xf32>
    %33 = vector.shape_cast %30 : vector<8x128xf32> to vector<1x8x128xf32>
    tpu.vector_store %arg7[%c0_15, %c0_16, %c0_17], %33 {strides = array<i32>} : memref<1x8x128xf32, #tpu.memory_space<vmem>>, vector<1x8x128xf32>,
    %c0_18 = arith.constant 0 : index
    %c0_19 = arith.constant 0 : index
    %34 = vector.load %arg8[%c0_18, %c0_19] : memref<8x128xf32, #tpu.memory_space<vmem>>, vector<8x128xf32>
    tpu.vector_store %arg8[%c0_18, %c0_19], %30 {strides = array<i32>} : memref<8x128xf32, #tpu.memory_space<vmem>>, vector<8x128xf32>,
    return
  }
  func.func @transform_0(%arg0: i32, %arg1: i32) -> (i32, i32, i32) {
    %c0_i32 = arith.constant 0 : i32
    %c0_i32_0 = arith.constant 0 : i32
    return %arg0, %arg1, %c0_i32 : i32, i32, i32
  }
  func.func @transform_1(%arg0: i32, %arg1: i32) -> (i32, i32) {
    %c0_i32 = arith.constant 0 : i32
    %c0_i32_0 = arith.constant 0 : i32
    return %arg0, %c0_i32 : i32, i32
  }
  func.func @transform_2(%arg0: i32, %arg1: i32) -> (i32, i32) {
    %c0_i32 = arith.constant 0 : i32
    %c0_i32_0 = arith.constant 0 : i32
    %c0_i32_1 = arith.constant 0 : i32
    return %c0_i32, %c0_i32_0 : i32, i32
  }
  func.func @transform_3(%arg0: i32, %arg1: i32) -> (i32, i32) {
    %c0_i32 = arith.constant 0 : i32
    %c0_i32_0 = arith.constant 0 : i32
    %c0_i32_1 = arith.constant 0 : i32
    return %c0_i32, %c0_i32_0 : i32, i32
  }
  func.func @transform_4(%arg0: i32, %arg1: i32) -> (i32, i32) {
    %c0_i32 = arith.constant 0 : i32
    %c0_i32_0 = arith.constant 0 : i32
    %c0_i32_1 = arith.constant 0 : i32
    return %c0_i32, %c0_i32_0 : i32, i32
  }
  func.func @transform_5(%arg0: i32, %arg1: i32) -> (i32, i32, i32) {
    %c0_i32 = arith.constant 0 : i32
    %c0_i32_0 = arith.constant 0 : i32
    return %arg1, %arg0, %c0_i32 : i32, i32, i32
  }
}

</mosaic_0001>

<llo_original>
// kernel: tpu_custom_call.1
$region0: #{tpu_custom_call.1}
  #allocation0 [shape = 'u32[]', space=smem, size = 0x4, offset = 0x4, fixed_abs, tag = 'smem constant byte address 0x4 - core index']
  #allocation1 [shape = 'u32[144,128]{1,0:T(1,128)}', space=vmem, size = 0x12000, scoped, tag = 'internal scratch']
  #allocation2 [shape = 'f32[8,128]{1,0:T(8,128)}', space=vmem, size = 0x1000, scoped, tag = 'scratch operand']
  %s0 = inlined_call_operand.hbm [shape: f32[1,8,16], index: 0, kind: input, shape index: {}]
  %s1 = inlined_call_operand.hbm [shape: f32[8,128], index: 1, kind: input, shape index: {}]
  %s2 = inlined_call_operand.hbm [shape: f32[16,128], index: 2, kind: input, shape index: {}]
  %s3 = inlined_call_operand.hbm [shape: f32[128,128], index: 3, kind: input, shape index: {}]
  %s4 = inlined_call_operand.vmem [shape: f32[1,128], index: 4, kind: input, shape index: {}]
  %s5 = inlined_call_operand.hbm [shape: f32[1,8,128], index: 5, kind: output, shape index: {}]
  %s6 = sld [smem:[#allocation0]]
  $region50: #{tpu_custom_call.1} parent=0
    _
  %s8 = ssub.s32 1, %s6
  %s9 = scalar_select 0, %s8, %s6
  $region1: #{tpu_custom_call.1} parent=0
    #allocation3 [shape = 'u8[4096]{0}', space=vmem, size = 0x1000, scoped, tag = 'input window, operand 0, single buffered']
    #allocation4 [shape = 's32[1]{0}', space=sflag, size = 0x4, scoped, tag = 'scoped memory for tpu_custom_call.1']
    #allocation5 [shape = 's32[1]{0}', space=sflag, size = 0x4, scoped, tag = 'scoped memory for tpu_custom_call.1']
    #allocation6 [shape = 'u8[4096]{0}', space=vmem, size = 0x1000, scoped, tag = 'input window, operand 1, single buffered']
    #allocation7 [shape = 's32[1]{0}', space=sflag, size = 0x4, scoped, tag = 'scoped memory for tpu_custom_call.1']
    #allocation8 [shape = 'u8[8192]{0}', space=vmem, size = 0x2000, scoped, tag = 'input window, operand 2, single buffered']
    #allocation9 [shape = 'u8[65536]{0}', space=vmem, size = 0x10000, scoped, tag = 'input window, operand 3, single buffered']
    #allocation10 [shape = 's32[1]{0}', space=sflag, size = 0x4, scoped, tag = 'scoped memory for tpu_custom_call.1']
    #allocation11 [shape = 'u8[4096]{0}', space=vmem, size = 0x1000, scoped, tag = 'output window, operand 0, single buffered']
    %10 = vsyncpa [#allocation4], 0
    %11 = vsyncpa [#allocation7], 0
    %12 = vsyncpa [#allocation10], 0
    %13 = vsyncpa [#allocation5], 0
    // Predicated region
    $region2: #{tpu_custom_call.1} parent=1 // pred_check
      _
    $region3: #{tpu_custom_call.1} parent=1 // pred_check_branch
      %15 = sbr.rel (0) target = $region5
    $region4: #{tpu_custom_call.1} parent=1 // pred_region
      %s17 = ssub.s32 128, 128
      %18 = vsyncadd [#allocation4], %s17
      %s20 = sshll.u32 [#allocation3], 4
      %s21 = int_to_ptr.vmem [resolvable:$true] %s20
      %23 = dma.hbm_to_vmem [thread:$0]  %s0, 128, %s21, [#allocation4]
    $region5: #{tpu_custom_call.1} parent=1 // pred_fallthru
      _
    // Predicated region
    $region6: #{tpu_custom_call.1} parent=1 // pred_check
      _
    $region7: #{tpu_custom_call.1} parent=1 // pred_check_branch
      %25 = sbr.rel (0) target = $region9
    $region8: #{tpu_custom_call.1} parent=1 // pred_region
      %s27 = ssub.s32 128, 128
      %28 = vsyncadd [#allocation7], %s27
      %s30 = sshll.u32 [#allocation6], 4
      %s31 = int_to_ptr.vmem [resolvable:$true] %s30
      %33 = dma.hbm_to_vmem [thread:$0]  %s1, 128, %s31, [#allocation7]
    $region9: #{tpu_custom_call.1} parent=1 // pred_fallthru
      _
    // Predicated region
    $region10: #{tpu_custom_call.1} parent=1 // pred_check
      _
    $region11: #{tpu_custom_call.1} parent=1 // pred_check_branch
      %35 = sbr.rel (0) target = $region13
    $region12: #{tpu_custom_call.1} parent=1 // pred_region
      %s37 = ssub.s32 256, 256
      %38 = vsyncadd [#allocation7], %s37
      %s39 = sshll.u32 [#allocation8], 4
      %s40 = int_to_ptr.vmem [resolvable:$true] %s39
      %45 = dma.hbm_to_vmem [thread:$0]  %s2, 256, %s40, [#allocation7], 128, 128, 8
    $region13: #{tpu_custom_call.1} parent=1 // pred_fallthru
      _
    // Predicated region
    $region14: #{tpu_custom_call.1} parent=1 // pred_check
      _
    $region15: #{tpu_custom_call.1} parent=1 // pred_check_branch
      %47 = sbr.rel (0) target = $region17
    $region16: #{tpu_custom_call.1} parent=1 // pred_region
      %s49 = ssub.s32 2048, 2048
      %50 = vsyncadd [#allocation10], %s49
      %s51 = sshll.u32 [#allocation9], 4
      %s52 = int_to_ptr.vmem [resolvable:$true] %s51
      %57 = dma.hbm_to_vmem [thread:$0]  %s3, 2048, %s52, [#allocation10], 128, 128, 8
    $region17: #{tpu_custom_call.1} parent=1 // pred_fallthru
      _
    // Predicated region
    $region18: #{tpu_custom_call.1} parent=1 // pred_check
      _
    $region19: #{tpu_custom_call.1} parent=1 // pred_check_branch
      %59 = sbr.rel (0) target = $region21
    $region20: #{tpu_custom_call.1} parent=1 // pred_region
      _
    $region21: #{tpu_custom_call.1} parent=1 // pred_fallthru
      _
    // Predicated region
    $region22: #{tpu_custom_call.1} parent=1 // pred_check
      _
    $region23: #{tpu_custom_call.1} parent=1 // pred_check_branch
      %61 = sbr.rel (0) target = $region25
    $region24: #{tpu_custom_call.1} parent=1 // pred_region
      %62 = dma.done [#allocation4], 128
    $region25: #{tpu_custom_call.1} parent=1 // pred_fallthru
      _
    // Predicated region
    $region26: #{tpu_custom_call.1} parent=1 // pred_check
      _
    $region27: #{tpu_custom_call.1} parent=1 // pred_check_branch
      %64 = sbr.rel (0) target = $region29
    $region28: #{tpu_custom_call.1} parent=1 // pred_region
      %65 = dma.done [#allocation7], 128
    $region29: #{tpu_custom_call.1} parent=1 // pred_fallthru
      _
    // Predicated region
    $region30: #{tpu_custom_call.1} parent=1 // pred_check
      _
    $region31: #{tpu_custom_call.1} parent=1 // pred_check_branch
      %67 = sbr.rel (0) target = $region33
    $region32: #{tpu_custom_call.1} parent=1 // pred_region
      %68 = dma.done [#allocation7], 256
    $region33: #{tpu_custom_call.1} parent=1 // pred_fallthru
      _
    // Predicated region
    $region34: #{tpu_custom_call.1} parent=1 // pred_check
      _
    $region35: #{tpu_custom_call.1} parent=1 // pred_check_branch
      %70 = sbr.rel (0) target = $region37
    $region36: #{tpu_custom_call.1} parent=1 // pred_region
      %71 = dma.done [#allocation10], 2048
    $region37: #{tpu_custom_call.1} parent=1 // pred_fallthru
      _
    %p72 = scmp.eq.s32.totalorder 0, 0
    // Predicated region
    $region38: #{tpu_custom_call.1} parent=1 // pred_check
      %p73 = pneg %p72
    $region39: #{tpu_custom_call.1} parent=1 // pred_check_branch
      %75 = sbr.rel (%p73) target = $region41
    $region40: #{tpu_custom_call.1} parent=1 // pred_region
      %v76 = vld [vmem:[#allocation6] sm:$0xff]
      %77 = vst [vmem:[#allocation2] sm:$0xff] %v76
    $region41: #{tpu_custom_call.1} parent=1 // pred_fallthru
      _
    %v78 = vld [vmem:[#allocation3] sm:$0xff]
    %v79 = vld [vmem:[#allocation8] sm:$0xff]
    %v80 = vld [vmem:[#allocation8 + $0x8] sm:$0xff]
    %v81 = vld [vmem:[%s4] sm:$0x1]
    %v83 = vlaneseq
    %v84 = vshrl.u32 %v83, 7
    %v85 = vsub.s32 0, %v84
    %v86 = vrot.slane %v81, %v85
    %vm88 = vcmask 130048
    %v90 = vsel %vm88, %v78, 0
    %92 = vmatprep.subr.mxu0 0.0
    %93 = vmatpush1.msra.mxu0 %v79
    %94 = vmatprep.subr.mxu0 0.0
    %95 = vmatpush1.msra.mxu0 %v80
    %96 = vmatprep.subr.mxu0 0.0
    %97 = vmatpush1.msra.mxu0 0.0
    %98 = vmatprep.subr.mxu0 0.0
    %99 = vmatpush1.msra.mxu0 0.0
    %100 = vmatprep.subr.mxu0 0.0
    %101 = vmatpush1.msra.mxu0 0.0
    %102 = vmatprep.subr.mxu0 0.0
    %103 = vmatpush1.msra.mxu0 0.0
    %104 = vmatprep.subr.mxu0 0.0
    %105 = vmatpush1.msra.mxu0 0.0
    %106 = vmatprep.subr.mxu0 0.0
    %107 = vmatpush1.msra.mxu0 0.0
    %108 = vmatprep.subr.mxu0 0.0
    %109 = vmatpush1.msra.mxu0 0.0
    %110 = vmatprep.subr.mxu0 0.0
    %111 = vmatpush1.msra.mxu0 0.0
    %112 = vmatprep.subr.mxu0 0.0
    %113 = vmatpush1.msra.mxu0 0.0
    %114 = vmatprep.subr.mxu0 0.0
    %115 = vmatpush1.msra.mxu0 0.0
    %116 = vmatprep.subr.mxu0 0.0
    %117 = vmatpush1.msra.mxu0 0.0
    %118 = vmatprep.subr.mxu0 0.0
    %119 = vmatpush1.msra.mxu0 0.0
    %120 = vmatprep.subr.mxu0 0.0
    %121 = vmatpush1.msra.mxu0 0.0
    %122 = vmatprep.subr.mxu0 0.0
    %123 = vmatpush1.msra.mxu0 0.0
    %124 = vmatprep.subr.mxu0 0.0
    %125 = vmatpush1.msra.mxu0 0.0
    %126 = vmatprep.subr.mxu0 0.0
    %127 = vmatpush1.msra.mxu0 0.0
    %128 = vmatprep.subr.mxu0 0.0
    %129 = vmatpush1.msra.mxu0 0.0
    %130 = vmatprep.subr.mxu0 0.0
    %131 = vmatpush1.msra.mxu0 0.0
    %132 = vmatprep.subr.mxu0 0.0
    %133 = vmatpush1.msra.mxu0 0.0
    %134 = vmatprep.subr.mxu0 0.0
    %135 = vmatpush1.msra.mxu0 0.0
    %136 = vmatprep.subr.mxu0 0.0
    %137 = vmatpush1.msra.mxu0 0.0
    %138 = vmatprep.subr.mxu0 0.0
    %139 = vmatpush1.msra.mxu0 0.0
    %140 = vmatprep.subr.mxu0 0.0
    %141 = vmatpush1.msra.mxu0 0.0
    %142 = vmatprep.subr.mxu0 0.0
    %143 = vmatpush1.msra.mxu0 0.0
    %144 = vmatprep.subr.mxu0 0.0
    %145 = vmatpush1.msra.mxu0 0.0
    %146 = vmatprep.subr.mxu0 0.0
    %147 = vmatpush1.msra.mxu0 0.0
    %148 = vmatprep.subr.mxu0 0.0
    %149 = vmatpush1.msra.mxu0 0.0
    %150 = vmatprep.subr.mxu0 0.0
    %151 = vmatpush1.msra.mxu0 0.0
    %152 = vmatprep.subr.mxu0 0.0
    %153 = vmatpush1.msra.mxu0 0.0
    %154 = vmatprep.subr.mxu0 0.0
    %155 = vmatpush1.msra.mxu0 0.0
    %156 = vmatprep.mubr.f32.mxu0 0.0
    %157 = vmatmul.mubr.f32.gmra.mrb[0].mxu0 %v90
    %v158 = vpop.f32.mrb[0].mxu0
    %v159 = vadd.f32 %v86, %v158
    %v160 = vpop.f32.mrb[0].mxu0
    %161 = vdwg.mxu0
    %v162 = vld [vmem:[#allocation9] sm:$0xff]
    %v163 = vld [vmem:[#allocation9 + $0x8] sm:$0xff]
    %v164 = vld [vmem:[#allocation9 + $0x10] sm:$0xff]
    %v165 = vld [vmem:[#allocation9 + $0x18] sm:$0xff]
    %v166 = vld [vmem:[#allocation9 + $0x20] sm:$0xff]
    %v167 = vld [vmem:[#allocation9 + $0x28] sm:$0xff]
    %v168 = vld [vmem:[#allocation9 + $0x30] sm:$0xff]
    %v169 = vld [vmem:[#allocation9 + $0x38] sm:$0xff]
    %v170 = vld [vmem:[#allocation9 + $0x40] sm:$0xff]
    %v171 = vld [vmem:[#allocation9 + $0x48] sm:$0xff]
    %v172 = vld [vmem:[#allocation9 + $0x50] sm:$0xff]
    %v173 = vld [vmem:[#allocation9 + $0x58] sm:$0xff]
    %v174 = vld [vmem:[#allocation9 + $0x60] sm:$0xff]
    %v175 = vld [vmem:[#allocation9 + $0x68] sm:$0xff]
    %v176 = vld [vmem:[#allocation9 + $0x70] sm:$0xff]
    %v177 = vld [vmem:[#allocation9 + $0x78] sm:$0xff]
    %v178 = vlaneseq
    %v179 = vand.u32 %v178, 127
    %vm180 = vcmp.lt.s32.totalorder %v179, 8
    %v181 = vld [vmem:[#allocation2] sm:$0xff]
    %182 = vmatprep.subr.mxu0 0.0
    %183 = vmatpush1.msra.mxu0 %v162
    %184 = vmatprep.subr.mxu0 0.0
    %185 = vmatpush1.msra.mxu0 %v163
    %186 = vmatprep.subr.mxu0 0.0
    %187 = vmatpush1.msra.mxu0 %v164
    %188 = vmatprep.subr.mxu0 0.0
    %189 = vmatpush1.msra.mxu0 %v165
    %190 = vmatprep.subr.mxu0 0.0
    %191 = vmatpush1.msra.mxu0 %v166
    %192 = vmatprep.subr.mxu0 0.0
    %193 = vmatpush1.msra.mxu0 %v167
    %194 = vmatprep.subr.mxu0 0.0
    %195 = vmatpush1.msra.mxu0 %v168
    %196 = vmatprep.subr.mxu0 0.0
    %197 = vmatpush1.msra.mxu0 %v169
    %198 = vmatprep.subr.mxu0 0.0
    %199 = vmatpush1.msra.mxu0 %v170
    %200 = vmatprep.subr.mxu0 0.0
    %201 = vmatpush1.msra.mxu0 %v171
    %202 = vmatprep.subr.mxu0 0.0
    %203 = vmatpush1.msra.mxu0 %v172
    %204 = vmatprep.subr.mxu0 0.0
    %205 = vmatpush1.msra.mxu0 %v173
    %206 = vmatprep.subr.mxu0 0.0
    %207 = vmatpush1.msra.mxu0 %v174
    %208 = vmatprep.subr.mxu0 0.0
    %209 = vmatpush1.msra.mxu0 %v175
    %210 = vmatprep.subr.mxu0 0.0
    %211 = vmatpush1.msra.mxu0 %v176
    %212 = vmatprep.subr.mxu0 0.0
    %213 = vmatpush1.msra.mxu0 %v177
    %214 = vmatprep.subr.mxu0 0.0
    %215 = vmatpush1.msra.mxu0 0.0
    %216 = vmatprep.subr.mxu0 0.0
    %217 = vmatpush1.msra.mxu0 0.0
    %218 = vmatprep.subr.mxu0 0.0
    %219 = vmatpush1.msra.mxu0 0.0
    %220 = vmatprep.subr.mxu0 0.0
    %221 = vmatpush1.msra.mxu0 0.0
    %222 = vmatprep.subr.mxu0 0.0
    %223 = vmatpush1.msra.mxu0 0.0
    %224 = vmatprep.subr.mxu0 0.0
    %225 = vmatpush1.msra.mxu0 0.0
    %226 = vmatprep.subr.mxu0 0.0
    %227 = vmatpush1.msra.mxu0 0.0
    %228 = vmatprep.subr.mxu0 0.0
    %229 = vmatpush1.msra.mxu0 0.0
    %230 = vmatprep.subr.mxu0 0.0
    %231 = vmatpush1.msra.mxu0 0.0
    %232 = vmatprep.subr.mxu0 0.0
    %233 = vmatpush1.msra.mxu0 0.0
    %234 = vmatprep.subr.mxu0 0.0
    %235 = vmatpush1.msra.mxu0 0.0
    %236 = vmatprep.subr.mxu0 0.0
    %237 = vmatpush1.msra.mxu0 0.0
    %238 = vmatprep.subr.mxu0 0.0
    %239 = vmatpush1.msra.mxu0 0.0
    %240 = vmatprep.subr.mxu0 0.0
    %241 = vmatpush1.msra.mxu0 0.0
    %242 = vmatprep.subr.mxu0 0.0
    %243 = vmatpush1.msra.mxu0 0.0
    %244 = vmatprep.subr.mxu0 0.0
    %245 = vmatpush1.msra.mxu0 0.0
    %246 = vmatprep.mubr.f32.mxu0 0.0
    %247 = vmatmul.mubr.f32.gmra.mrb[0].mxu0 %v181
    %v248 = vpop.f32.mrb[0].mxu0
    %v249 = vadd.f32 0.0, %v248
    %v250 = vpop.f32.mrb[0].mxu0
    %251 = vdwg.mxu0
    %v252 = vadd.f32 %v159, %v249
    %v253 = vsel %vm180, %v252, -1e+30
    %254 = vmax.xlane.f32.xlu0 %v253
    %v255 = vpop.xlane.xlu0 %254
    %v256 = vsub.f32 %v253, %v255
    %v257 = vmul.f32 %v256, 1.442695
    %v258 = vpow.pop %v257
    %259 = vadd.xlane.f32.xlu0 %v258
    %v260 = vpop.xlane.xlu0 %259
    %v261 = vlog2.pop %v260
    %v262 = vmul.f32 %v261, 0.6931472
    %v263 = vadd.f32 %v262, %v255
    %v264 = vsub.f32 %v252, %v263
    %v265 = vsel %vm180, %v264, %v252
    %266 = vst [vmem:[#allocation11] sm:$0xff] %v265
    %267 = vst [vmem:[#allocation2] sm:$0xff] %v265
    // Predicated region
    $region42: #{tpu_custom_call.1} parent=1 // pred_check
      _
    $region43: #{tpu_custom_call.1} parent=1 // pred_check_branch
      %269 = sbr.rel (0) target = $region45
    $region44: #{tpu_custom_call.1} parent=1 // pred_region
      %s271 = ssub.s32 128, 128
      %272 = vsyncadd [#allocation5], %s271
      %s274 = sshll.u32 [#allocation11], 4
      %s275 = int_to_ptr.vmem [resolvable:$true] %s274
      %277 = dma.vmem_to_hbm [thread:$0]  %s275, 128, %s5, [#allocation5]
    $region45: #{tpu_custom_call.1} parent=1 // pred_fallthru
      _
    // Predicated region
    $region46: #{tpu_custom_call.1} parent=1 // pred_check
      _
    $region47: #{tpu_custom_call.1} parent=1 // pred_check_branch
      %279 = sbr.rel (0) target = $region49
    $region48: #{tpu_custom_call.1} parent=1 // pred_region
      %280 = dma.done [#allocation5], 128
    $region49: #{tpu_custom_call.1} parent=1 // pred_fallthru
      _
    %281 = vsyncpa [#allocation4], 1
    %282 = vsyncpa [#allocation7], 1
    %283 = vsyncpa [#allocation10], 1
    %284 = vsyncpa [#allocation5], 1

</llo_original>
